<compile_context>
chip_gen: v6e
topology: v6e:2x2x1
jax: 0.10.0
libtpu: 0.0.40
codegen_flags: <defaults>
</compile_context>

<pallas_src>
import functools

import jax
import jax.numpy as jnp
from jax import lax
from jax.experimental import pallas as pl
from jax.experimental.pallas import tpu as pltpu


def _banded_weights(w_oihw, W):
    """OIHW (Cout,Cin,3,3) conv weights -> (3*W*Cin, W*Cout) banded matrix.

    M[kh*W*Cin + w1*Cin + ci, w0*Cout + co] = w[co, ci, kh, w1 - w0 + 1] when
    |w1 - w0| <= 1, else 0.  Row-block kh multiplies the activation rows
    shifted by (kh - 1) in H; inside a block the zero band realizes the width
    padding and the Cin->Cout mixing, so a full 3x3 conv over the lane-packed
    (B*H, W*C) layout is a single K = 3*W*Cin matmul.
    """
    Cout, Cin, KH, KW = w_oihw.shape
    wt = jnp.transpose(w_oihw, (2, 3, 1, 0))            # (kh, kw, ci, co)
    w0 = jnp.arange(W)[None, :]
    w1 = jnp.arange(W)[:, None]
    kw = w1 - w0 + 1                                     # (w1, w0)
    valid = ((kw >= 0) & (kw <= KW - 1)).astype(wt.dtype)
    kw_c = jnp.clip(kw, 0, KW - 1)
    band = wt[:, kw_c, :, :]                             # (kh, w1, w0, ci, co)
    band = band * valid[None, :, :, None, None]
    band = jnp.transpose(band, (0, 1, 3, 2, 4))          # (kh, w1, ci, w0, co)
    return band.reshape(KH * W * Cin, W * Cout)


def _make_kernel(B, H, W, C, *, scale, eps):
    WC = W * C
    BH = B * H
    inv_n = 1.0 / float(B * H * W)

    def _channel_sum_bcast(row_vec):
        """(1, W*C) lane vector -> per-channel totals broadcast back over w.

        Summing lane rotations by multiples of C sums every lane in the same
        channel residue class; exact f32, runs on the XLU (separate slot)."""
        if W & (W - 1) == 0:                   # power-of-two W: log-step
            total = row_vec
            s = C
            while s < WC:
                total = total + pltpu.roll(total, shift=s, axis=1)
                s *= 2
            return total
        total = row_vec
        for j in range(1, W):
            total = total + pltpu.roll(row_vec, shift=j * C, axis=1)
        return total

    def kernel(x_ref, w1_ref, w2_ref, cb_ref, alpha_ref, out_ref):
        alpha = alpha_ref[0]                    # PReLU parameter (SMEM scalar)
        cb = cb_ref[...]                        # (8, WC): row 0 = gamma, row 1 = beta
        gamma_l = cb[0:1, :]
        beta_l = cb[1:2, :]

        # Height-halo masks, computed once and shared by both stages: the
        # sublane rolls below wrap across image boundaries; these masks zero
        # the wrapped rows, which realizes the zero padding in H.
        row = lax.broadcasted_iota(jnp.int32, (BH, WC), 0)
        h_idx = (row & (H - 1)) if (H & (H - 1) == 0) else (row % H)
        not_top = h_idx != 0                    # kh=0 tap invalid on first row
        not_bot = h_idx != (H - 1)              # kh=2 tap invalid on last row

        def conv_bn_act(x2, w_ref):
            # ---- 3x3 conv as ONE aligned (BH, 3*WC) @ (3*WC, WC) matmul ----
            # Height taps: static sublane rolls (XLU) + halo masking; width
            # taps and Cin->Cout mixing live in the banded weight matrix.
            xm1 = jnp.where(not_top, pltpu.roll(x2, shift=1, axis=0), 0.0)
            xp1 = jnp.where(not_bot, pltpu.roll(x2, shift=BH - 1, axis=0), 0.0)
            xk = jnp.concatenate([xm1, x2, xp1], axis=1)        # (BH, 3*WC)
            acc = jnp.dot(xk, w_ref[...],
                          preferred_element_type=jnp.float32)   # (BH, WC)
            # Conv bias intentionally omitted: a per-channel constant is
            # cancelled exactly by the BN mean subtraction below.

            # ---- BatchNorm2d, training mode, single pass ----
            mean_l = _channel_sum_bcast(
                jnp.sum(acc, axis=0, keepdims=True)) * inv_n
            ex2_l = _channel_sum_bcast(
                jnp.sum(acc * acc, axis=0, keepdims=True)) * inv_n
            var_l = ex2_l - mean_l * mean_l
            scale_l = gamma_l * lax.rsqrt(var_l + eps)
            shift_l = beta_l - mean_l * scale_l
            y = acc * scale_l + shift_l

            # ---- PReLU (single shared parameter) ----
            return jnp.where(y >= 0.0, y, alpha * y)

        x0 = x_ref[...]                         # also the residual
        h = conv_bn_act(x0, w1_ref)
        h = conv_bn_act(h, w2_ref)
        if scale != 1.0:
            h = h * scale
        out_ref[...] = h + x0                   # lane-dense (B*H, W*C) store

    return kernel


def prepare_resnet_block_params(params, W):
    """One-time weight preprocessing (keep OFF the per-call critical path).

    Band-expands the two conv kernels into (3*W*C, W*C) matmul matrices and
    packs gamma/beta lane-dense into ONE aligned (8, W*C) tile.  Conv biases
    are dropped here because training-mode BatchNorm cancels them exactly.
    """
    w1, b1, w2, b2, gamma, beta, alpha = params
    del b1, b2                                  # cancelled by BN mean subtraction
    C = w1.shape[0]
    WC = W * C
    w1_full = _banded_weights(w1.astype(jnp.float32), W)      # (3*WC, WC)
    w2_full = _banded_weights(w2.astype(jnp.float32), W)      # (3*WC, WC)
    cb = jnp.zeros((8, WC), jnp.float32)
    cb = cb.at[0].set(jnp.tile(gamma.astype(jnp.float32), W))
    cb = cb.at[1].set(jnp.tile(beta.astype(jnp.float32), W))
    alpha_s = jnp.asarray(alpha, jnp.float32).reshape(1)
    return w1_full, w2_full, cb, alpha_s


@functools.partial(jax.jit, static_argnames=("scale", "eps"))
def resnet_block_forward_nhwc(x_nhwc, w1_full, w2_full, cb, alpha_s,
                              *, scale=1.0, eps=1e-5):
    """Pallas ResnetBlock forward on NHWC activations + prepared weights."""
    B, H, W, C = x_nhwc.shape
    WC = W * C
    BH = B * H
    assert WC % 128 == 0, "W*C must be a multiple of 128 (lane-dense packing)"
    assert BH % 8 == 0, "B*H must be a multiple of 8 (sublane alignment)"

    xp = x_nhwc.reshape(BH, WC).astype(jnp.float32)   # free reshape, no transpose

    vmem = pl.BlockSpec(memory_space=pltpu.MemorySpace.VMEM)
    smem = pl.BlockSpec(memory_space=pltpu.MemorySpace.SMEM)

    out2 = pl.pallas_call(
        _make_kernel(B, H, W, C, scale=float(scale), eps=float(eps)),
        out_shape=jax.ShapeDtypeStruct((BH, WC), jnp.float32),
        in_specs=[vmem, vmem, vmem, vmem, smem],
        out_specs=vmem,
    )(xp, w1_full, w2_full, cb, alpha_s)
    return out2.reshape(B, H, W, C)


def resnet_block_forward(x_nchw, params, *, scale=1.0, eps=1e-5):
    """NCHW convenience wrapper (layout glue only, for PyTorch-layout parity).

    Production callers should carry NHWC activations and call
    prepare_resnet_block_params once, then resnet_block_forward_nhwc per step.
    """
    prepared = prepare_resnet_block_params(params, x_nchw.shape[3])
    x_nhwc = jnp.transpose(x_nchw, (0, 2, 3, 1))
    out = resnet_block_forward_nhwc(x_nhwc, *prepared, scale=scale, eps=eps)
    return jnp.transpose(out, (0, 3, 1, 2)).astype(x_nchw.dtype)


def _reference_forward(x_nchw, params, *, scale=1.0, eps=1e-5):
    """Pure-JAX reference of the PyTorch forward pass (training-mode BN)."""
    w1, b1, w2, b2, gamma, beta, alpha = params

    def conv(x, w, b):
        y = lax.conv_general_dilated(
            x, w, window_strides=(1, 1), padding=((1, 1), (1, 1)),
            dimension_numbers=("NCHW", "OIHW", "NCHW"),
            precision=lax.Precision.HIGHEST)
        return y + b.reshape(1, -1, 1, 1)

    def bn(y):
        mean = jnp.mean(y, axis=(0, 2, 3), keepdims=True)
        var = jnp.mean((y - mean) ** 2, axis=(0, 2, 3), keepdims=True)
        return ((y - mean) * lax.rsqrt(var + eps) * gamma.reshape(1, -1, 1, 1)
                + beta.reshape(1, -1, 1, 1))

    def act(y):
        return jnp.where(y >= 0.0, y, alpha * y)

    out = act(bn(conv(x_nchw, w1, b1)))
    out = act(bn(conv(out, w2, b2)))
    return out * scale + x_nchw


if __name__ == "__main__":
    B, C, H, W = 2, 8, 16, 16          # W*C = 128 -> exactly lane-dense
    key = jax.random.PRNGKey(0)
    keys = jax.random.split(key, 8)

    x = jax.random.normal(keys[0], (B, C, H, W), jnp.float32)
    # Deterministic synthetic parameters (shapes from ResnetBlock.__init__,
    # kernel_size=3, groups=1, bias=True, norm='batch', activation='prelu').
    w1 = 0.1 * jax.random.normal(keys[1], (C, C, 3, 3), jnp.float32)  # OIHW
    b1 = 0.1 * jax.random.normal(keys[2], (C,), jnp.float32)
    w2 = 0.1 * jax.random.normal(keys[3], (C, C, 3, 3), jnp.float32)  # OIHW
    b2 = 0.1 * jax.random.normal(keys[4], (C,), jnp.float32)
    gamma = 1.0 + 0.1 * jax.random.normal(keys[5], (C,), jnp.float32)
    beta = 0.1 * jax.random.normal(keys[6], (C,), jnp.float32)
    alpha = jnp.float32(0.5)  # torch.nn.PReLU(init=0.5), single shared param
    params = (w1, b1, w2, b2, gamma, beta, alpha)

    out = jax.block_until_ready(resnet_block_forward(x, params))
    ref = jax.block_until_ready(_reference_forward(x, params))

    assert out.shape == x.shape and out.dtype == x.dtype
    # Kernel now keeps f32 matmul operands (previous version cast to bf16), so
    # it tracks the HIGHEST-precision reference closely; the margin covers the
    # MXU's f32 multi-pass emulation and the single-pass E[x^2]-mean^2 variance.
    if not jnp.allclose(out, ref, atol=1e-2, rtol=1e-2):
        raise AssertionError(
            f"mismatch vs reference, max abs err = {jnp.max(jnp.abs(out - ref))}")
    print("KERNEL_OK")
</pallas_src>

<mosaic_0001>
module attributes {stable_mosaic.version = 11 : i64} {
  func.func @kernel(%arg0: memref<32x128xf32, #tpu.memory_space<vmem>>, %arg1: memref<384x128xf32, #tpu.memory_space<vmem>>, %arg2: memref<384x128xf32, #tpu.memory_space<vmem>>, %arg3: memref<8x128xf32, #tpu.memory_space<vmem>>, %arg4: memref<1xf32, #tpu.memory_space<smem>>, %arg5: memref<32x128xf32, #tpu.memory_space<vmem>>) attributes {dimension_semantics = [], scalar_prefetch = 0 : i64, scratch_operands = 0 : i64, tpu.core_type = #tpu.core_type<tc>} {
    %c0 = arith.constant 0 : index
    %0 = memref.load %arg4[%c0] : memref<1xf32, #tpu.memory_space<smem>>
    %c0_0 = arith.constant 0 : index
    %c0_1 = arith.constant 0 : index
    %1 = vector.load %arg3[%c0_0, %c0_1] : memref<8x128xf32, #tpu.memory_space<vmem>>, vector<8x128xf32>
    %2 = vector.extract_strided_slice %1 {offsets = [0, 0], sizes = [1, 128], strides = [1, 1]} : vector<8x128xf32> to vector<1x128xf32>
    %3 = vector.extract_strided_slice %1 {offsets = [1, 0], sizes = [1, 128], strides = [1, 1]} : vector<8x128xf32> to vector<1x128xf32>
    %4 = tpu.iota {dimensions = array<i32: 0>} : vector<32x128xi32>
    %c15_i32 = arith.constant 15 : i32
    %5 = vector.broadcast %c15_i32 : i32 to vector<32x128xi32>
    %6 = arith.andi %4, %5 : vector<32x128xi32>
    %c0_i32 = arith.constant 0 : i32
    %7 = vector.broadcast %c0_i32 : i32 to vector<32x128xi32>
    %8 = arith.cmpi ne, %6, %7 : vector<32x128xi32>
    %c15_i32_2 = arith.constant 15 : i32
    %9 = vector.broadcast %c15_i32_2 : i32 to vector<32x128xi32>
    %10 = arith.cmpi ne, %6, %9 : vector<32x128xi32>
    %c0_3 = arith.constant 0 : index
    %c0_4 = arith.constant 0 : index
    %11 = vector.load %arg0[%c0_3, %c0_4] : memref<32x128xf32, #tpu.memory_space<vmem>>, vector<32x128xf32>
    %c1_i32 = arith.constant 1 : i32
    %12 = tpu.dynamic_rotate %11 by %c1_i32 dim 0 : vector<32x128xf32>, i32 -> vector<32x128xf32>
    %cst = arith.constant 0.000000e+00 : f32
    %13 = vector.broadcast %cst : f32 to vector<32x128xf32>
    %14 = arith.select %8, %12, %13 : vector<32x128xi1>, vector<32x128xf32>
    %c31_i32 = arith.constant 31 : i32
    %15 = tpu.dynamic_rotate %11 by %c31_i32 dim 0 : vector<32x128xf32>, i32 -> vector<32x128xf32>
    %cst_5 = arith.constant 0.000000e+00 : f32
    %16 = vector.broadcast %cst_5 : f32 to vector<32x128xf32>
    %17 = arith.select %10, %15, %16 : vector<32x128xi1>, vector<32x128xf32>
    %18 = tpu.concatenate %14, %11, %17 in 1 : vector<32x128xf32>, vector<32x128xf32>, vector<32x128xf32> -> vector<32x384xf32>
    %c0_6 = arith.constant 0 : index
    %c0_7 = arith.constant 0 : index
    %19 = vector.load %arg1[%c0_6, %c0_7] : memref<384x128xf32, #tpu.memory_space<vmem>>, vector<384x128xf32>
    %cst_8 = arith.constant dense<0.000000e+00> : vector<32x128xf32>
    %20 = tpu.matmul %18, %19, %cst_8 {dimension_numbers = #tpu.dot_dimension_numbers<[1], [0], [0], [1], [0, 0, 1, 1], [], []>} : vector<32x384xf32>, vector<384x128xf32>, vector<32x128xf32> -> vector<32x128xf32>
    %cst_9 = arith.constant dense<0.000000e+00> : vector<128xf32>
    %21 = vector.multi_reduction <add>, %20, %cst_9 [0] : vector<32x128xf32> to vector<128xf32>
    %22 = vector.shape_cast %21 : vector<128xf32> to vector<1x128xf32>
    %c8_i32 = arith.constant 8 : i32
    %23 = tpu.dynamic_rotate %22 by %c8_i32 dim 1 : vector<1x128xf32>, i32 -> vector<1x128xf32>
    %24 = arith.addf %22, %23 : vector<1x128xf32>
    %c16_i32 = arith.constant 16 : i32
    %25 = tpu.dynamic_rotate %24 by %c16_i32 dim 1 : vector<1x128xf32>, i32 -> vector<1x128xf32>
    %26 = arith.addf %24, %25 : vector<1x128xf32>
    %c32_i32 = arith.constant 32 : i32
    %27 = tpu.dynamic_rotate %26 by %c32_i32 dim 1 : vector<1x128xf32>, i32 -> vector<1x128xf32>
    %28 = arith.addf %26, %27 : vector<1x128xf32>
    %c64_i32 = arith.constant 64 : i32
    %29 = tpu.dynamic_rotate %28 by %c64_i32 dim 1 : vector<1x128xf32>, i32 -> vector<1x128xf32>
    %30 = arith.addf %28, %29 : vector<1x128xf32>
    %cst_10 = arith.constant 0.001953125 : f32
    %31 = vector.broadcast %cst_10 : f32 to vector<1x128xf32>
    %32 = arith.mulf %30, %31 : vector<1x128xf32>
    %33 = arith.mulf %20, %20 : vector<32x128xf32>
    %cst_11 = arith.constant dense<0.000000e+00> : vector<128xf32>
    %34 = vector.multi_reduction <add>, %33, %cst_11 [0] : vector<32x128xf32> to vector<128xf32>
    %35 = vector.shape_cast %34 : vector<128xf32> to vector<1x128xf32>
    %c8_i32_12 = arith.constant 8 : i32
    %36 = tpu.dynamic_rotate %35 by %c8_i32_12 dim 1 : vector<1x128xf32>, i32 -> vector<1x128xf32>
    %37 = arith.addf %35, %36 : vector<1x128xf32>
    %c16_i32_13 = arith.constant 16 : i32
    %38 = tpu.dynamic_rotate %37 by %c16_i32_13 dim 1 : vector<1x128xf32>, i32 -> vector<1x128xf32>
    %39 = arith.addf %37, %38 : vector<1x128xf32>
    %c32_i32_14 = arith.constant 32 : i32
    %40 = tpu.dynamic_rotate %39 by %c32_i32_14 dim 1 : vector<1x128xf32>, i32 -> vector<1x128xf32>
    %41 = arith.addf %39, %40 : vector<1x128xf32>
    %c64_i32_15 = arith.constant 64 : i32
    %42 = tpu.dynamic_rotate %41 by %c64_i32_15 dim 1 : vector<1x128xf32>, i32 -> vector<1x128xf32>
    %43 = arith.addf %41, %42 : vector<1x128xf32>
    %cst_16 = arith.constant 0.001953125 : f32
    %44 = vector.broadcast %cst_16 : f32 to vector<1x128xf32>
    %45 = arith.mulf %43, %44 : vector<1x128xf32>
    %46 = arith.mulf %32, %32 : vector<1x128xf32>
    %47 = arith.subf %45, %46 : vector<1x128xf32>
    %cst_17 = arith.constant 9.99999974E-6 : f32
    %48 = vector.broadcast %cst_17 : f32 to vector<1x128xf32>
    %49 = arith.addf %47, %48 : vector<1x128xf32>
    %50 = math.rsqrt %49 : vector<1x128xf32>
    %51 = arith.mulf %2, %50 : vector<1x128xf32>
    %52 = arith.mulf %32, %51 : vector<1x128xf32>
    %53 = arith.subf %3, %52 : vector<1x128xf32>
    %54 = vector.broadcast %51 : vector<1x128xf32> to vector<32x128xf32>
    %55 = arith.mulf %20, %54 : vector<32x128xf32>
    %56 = vector.broadcast %53 : vector<1x128xf32> to vector<32x128xf32>
    %57 = arith.addf %55, %56 : vector<32x128xf32>
    %cst_18 = arith.constant 0.000000e+00 : f32
    %58 = vector.broadcast %cst_18 : f32 to vector<32x128xf32>
    %59 = arith.cmpf oge, %57, %58 : vector<32x128xf32>
    %60 = vector.broadcast %0 : f32 to vector<32x128xf32>
    %61 = arith.mulf %60, %57 : vector<32x128xf32>
    %62 = arith.select %59, %57, %61 : vector<32x128xi1>, vector<32x128xf32>
    %c1_i32_19 = arith.constant 1 : i32
    %63 = tpu.dynamic_rotate %62 by %c1_i32_19 dim 0 : vector<32x128xf32>, i32 -> vector<32x128xf32>
    %cst_20 = arith.constant 0.000000e+00 : f32
    %64 = vector.broadcast %cst_20 : f32 to vector<32x128xf32>
    %65 = arith.select %8, %63, %64 : vector<32x128xi1>, vector<32x128xf32>
    %c31_i32_21 = arith.constant 31 : i32
    %66 = tpu.dynamic_rotate %62 by %c31_i32_21 dim 0 : vector<32x128xf32>, i32 -> vector<32x128xf32>
    %cst_22 = arith.constant 0.000000e+00 : f32
    %67 = vector.broadcast %cst_22 : f32 to vector<32x128xf32>
    %68 = arith.select %10, %66, %67 : vector<32x128xi1>, vector<32x128xf32>
    %69 = tpu.concatenate %65, %62, %68 in 1 : vector<32x128xf32>, vector<32x128xf32>, vector<32x128xf32> -> vector<32x384xf32>
    %c0_23 = arith.constant 0 : index
    %c0_24 = arith.constant 0 : index
    %70 = vector.load %arg2[%c0_23, %c0_24] : memref<384x128xf32, #tpu.memory_space<vmem>>, vector<384x128xf32>
    %cst_25 = arith.constant dense<0.000000e+00> : vector<32x128xf32>
    %71 = tpu.matmul %69, %70, %cst_25 {dimension_numbers = #tpu.dot_dimension_numbers<[1], [0], [0], [1], [0, 0, 1, 1], [], []>} : vector<32x384xf32>, vector<384x128xf32>, vector<32x128xf32> -> vector<32x128xf32>
    %cst_26 = arith.constant dense<0.000000e+00> : vector<128xf32>
    %72 = vector.multi_reduction <add>, %71, %cst_26 [0] : vector<32x128xf32> to vector<128xf32>
    %73 = vector.shape_cast %72 : vector<128xf32> to vector<1x128xf32>
    %c8_i32_27 = arith.constant 8 : i32
    %74 = tpu.dynamic_rotate %73 by %c8_i32_27 dim 1 : vector<1x128xf32>, i32 -> vector<1x128xf32>
    %75 = arith.addf %73, %74 : vector<1x128xf32>
    %c16_i32_28 = arith.constant 16 : i32
    %76 = tpu.dynamic_rotate %75 by %c16_i32_28 dim 1 : vector<1x128xf32>, i32 -> vector<1x128xf32>
    %77 = arith.addf %75, %76 : vector<1x128xf32>
    %c32_i32_29 = arith.constant 32 : i32
    %78 = tpu.dynamic_rotate %77 by %c32_i32_29 dim 1 : vector<1x128xf32>, i32 -> vector<1x128xf32>
    %79 = arith.addf %77, %78 : vector<1x128xf32>
    %c64_i32_30 = arith.constant 64 : i32
    %80 = tpu.dynamic_rotate %79 by %c64_i32_30 dim 1 : vector<1x128xf32>, i32 -> vector<1x128xf32>
    %81 = arith.addf %79, %80 : vector<1x128xf32>
    %cst_31 = arith.constant 0.001953125 : f32
    %82 = vector.broadcast %cst_31 : f32 to vector<1x128xf32>
    %83 = arith.mulf %81, %82 : vector<1x128xf32>
    %84 = arith.mulf %71, %71 : vector<32x128xf32>
    %cst_32 = arith.constant dense<0.000000e+00> : vector<128xf32>
    %85 = vector.multi_reduction <add>, %84, %cst_32 [0] : vector<32x128xf32> to vector<128xf32>
    %86 = vector.shape_cast %85 : vector<128xf32> to vector<1x128xf32>
    %c8_i32_33 = arith.constant 8 : i32
    %87 = tpu.dynamic_rotate %86 by %c8_i32_33 dim 1 : vector<1x128xf32>, i32 -> vector<1x128xf32>
    %88 = arith.addf %86, %87 : vector<1x128xf32>
    %c16_i32_34 = arith.constant 16 : i32
    %89 = tpu.dynamic_rotate %88 by %c16_i32_34 dim 1 : vector<1x128xf32>, i32 -> vector<1x128xf32>
    %90 = arith.addf %88, %89 : vector<1x128xf32>
    %c32_i32_35 = arith.constant 32 : i32
    %91 = tpu.dynamic_rotate %90 by %c32_i32_35 dim 1 : vector<1x128xf32>, i32 -> vector<1x128xf32>
    %92 = arith.addf %90, %91 : vector<1x128xf32>
    %c64_i32_36 = arith.constant 64 : i32
    %93 = tpu.dynamic_rotate %92 by %c64_i32_36 dim 1 : vector<1x128xf32>, i32 -> vector<1x128xf32>
    %94 = arith.addf %92, %93 : vector<1x128xf32>
    %cst_37 = arith.constant 0.001953125 : f32
    %95 = vector.broadcast %cst_37 : f32 to vector<1x128xf32>
    %96 = arith.mulf %94, %95 : vector<1x128xf32>
    %97 = arith.mulf %83, %83 : vector<1x128xf32>
    %98 = arith.subf %96, %97 : vector<1x128xf32>
    %cst_38 = arith.constant 9.99999974E-6 : f32
    %99 = vector.broadcast %cst_38 : f32 to vector<1x128xf32>
    %100 = arith.addf %98, %99 : vector<1x128xf32>
    %101 = math.rsqrt %100 : vector<1x128xf32>
    %102 = arith.mulf %2, %101 : vector<1x128xf32>
    %103 = arith.mulf %83, %102 : vector<1x128xf32>
    %104 = arith.subf %3, %103 : vector<1x128xf32>
    %105 = vector.broadcast %102 : vector<1x128xf32> to vector<32x128xf32>
    %106 = arith.mulf %71, %105 : vector<32x128xf32>
    %107 = vector.broadcast %104 : vector<1x128xf32> to vector<32x128xf32>
    %108 = arith.addf %106, %107 : vector<32x128xf32>
    %cst_39 = arith.constant 0.000000e+00 : f32
    %109 = vector.broadcast %cst_39 : f32 to vector<32x128xf32>
    %110 = arith.cmpf oge, %108, %109 : vector<32x128xf32>
    %111 = vector.broadcast %0 : f32 to vector<32x128xf32>
    %112 = arith.mulf %111, %108 : vector<32x128xf32>
    %113 = arith.select %110, %108, %112 : vector<32x128xi1>, vector<32x128xf32>
    %114 = arith.addf %113, %11 : vector<32x128xf32>
    %c0_40 = arith.constant 0 : index
    %c0_41 = arith.constant 0 : index
    %115 = vector.load %arg5[%c0_40, %c0_41] : memref<32x128xf32, #tpu.memory_space<vmem>>, vector<32x128xf32>
    tpu.vector_store %arg5[%c0_40, %c0_41], %114 {strides = array<i32>} : memref<32x128xf32, #tpu.memory_space<vmem>>, vector<32x128xf32>,
    return
  }
}

</mosaic_0001>

<llo_original>
// kernel: resnet_block_forward_nhwc.1
$region0: #{resnet_block_forward_nhwc.1}
  #allocation0 [shape = 'u32[]', space=smem, size = 0x4, offset = 0x4, fixed_abs, tag = 'smem constant byte address 0x4 - core index']
  #allocation1 [shape = 'u32[144,128]{1,0:T(1,128)}', space=vmem, size = 0x12000, scoped, tag = 'internal scratch']
  #allocation2 [shape = 'f32[1]{0:T(128)S(6)}', space=smem, size = 0x200, scoped, tag = 'scoped memory for resnet_block_forward_nhwc.1']
  %s0 = inlined_call_operand.vmem [shape: f32[32,128], index: 0, kind: input, shape index: {}]
  %s1 = inlined_call_operand.vmem [shape: f32[384,128], index: 1, kind: input, shape index: {}]
  %s2 = inlined_call_operand.vmem [shape: f32[384,128], index: 2, kind: input, shape index: {}]
  %s3 = inlined_call_operand.vmem [shape: f32[8,128], index: 3, kind: input, shape index: {}]
  %s4 = inlined_call_operand.<no memory space> [shape: f32[1], index: 4, kind: input, shape index: {}]
  %s5 = inlined_call_operand.vmem [shape: f32[32,128], index: 5, kind: output, shape index: {}]
  %s6 = sld [smem:[#allocation0]]
  $region30: #{resnet_block_forward_nhwc.1} parent=0
    _
  %s8 = ssub.s32 1, %s6
  %s9 = scalar_select 0, %s8, %s6
  %10 = sst [smem:[#allocation2]] %s4
  // Predicated region
  $region2: #{resnet_block_forward_nhwc.1} parent=0 // pred_check
    _
  $region3: #{resnet_block_forward_nhwc.1} parent=0 // pred_check_branch
    %12 = sbr.rel (0) target = $region5
  $region4: #{resnet_block_forward_nhwc.1} parent=0 // pred_region
    _
  $region5: #{resnet_block_forward_nhwc.1} parent=0 // pred_fallthru
    _
  // Predicated region
  $region6: #{resnet_block_forward_nhwc.1} parent=0 // pred_check
    _
  $region7: #{resnet_block_forward_nhwc.1} parent=0 // pred_check_branch
    %14 = sbr.rel (0) target = $region9
  $region8: #{resnet_block_forward_nhwc.1} parent=0 // pred_region
    _
  $region9: #{resnet_block_forward_nhwc.1} parent=0 // pred_fallthru
    _
  // Predicated region
  $region10: #{resnet_block_forward_nhwc.1} parent=0 // pred_check
    _
  $region11: #{resnet_block_forward_nhwc.1} parent=0 // pred_check_branch
    %16 = sbr.rel (0) target = $region13
  $region12: #{resnet_block_forward_nhwc.1} parent=0 // pred_region
    _
  $region13: #{resnet_block_forward_nhwc.1} parent=0 // pred_fallthru
    _
  // Predicated region
  $region14: #{resnet_block_forward_nhwc.1} parent=0 // pred_check
    _
  $region15: #{resnet_block_forward_nhwc.1} parent=0 // pred_check_branch
    %18 = sbr.rel (0) target = $region17
  $region16: #{resnet_block_forward_nhwc.1} parent=0 // pred_region
    _
  $region17: #{resnet_block_forward_nhwc.1} parent=0 // pred_fallthru
    _
  // Predicated region
  $region18: #{resnet_block_forward_nhwc.1} parent=0 // pred_check
    _
  $region19: #{resnet_block_forward_nhwc.1} parent=0 // pred_check_branch
    %20 = sbr.rel (0) target = $region21
  $region20: #{resnet_block_forward_nhwc.1} parent=0 // pred_region
    _
  $region21: #{resnet_block_forward_nhwc.1} parent=0 // pred_fallthru
    _
  %s21 = sld [smem:[#allocation2]]
  %v22 = vld [vmem:[%s3] sm:$0xff]
  %v23 = vlaneseq
  %v24 = vshrl.u32 %v23, 7
  %v25 = vadd.s32 %v24, 8
  %v26 = vadd.s32 %v24, 16
  %v27 = vadd.s32 %v24, 24
  %v28 = vand.u32 %v24, 15
  %v29 = vand.u32 %v25, 15
  %v30 = vand.u32 %v26, 15
  %v31 = vand.u32 %v27, 15
  %vm32 = vcmp.ne.s32.totalorder %v28, 0
  %vm33 = vcmp.ne.s32.totalorder %v29, 0
  %vm34 = vcmp.ne.s32.totalorder %v30, 0
  %vm35 = vcmp.ne.s32.totalorder %v31, 0
  %vm36 = vcmp.ne.s32.totalorder %v28, 15
  %vm37 = vcmp.ne.s32.totalorder %v29, 15
  %vm38 = vcmp.ne.s32.totalorder %v30, 15
  %vm39 = vcmp.ne.s32.totalorder %v31, 15
  %v40 = vld [vmem:[%s0] sm:$0xff]
  %v41 = vld [vmem:[%s0 + $0x8] sm:$0xff]
  %v42 = vld [vmem:[%s0 + $0x10] sm:$0xff]
  %v43 = vld [vmem:[%s0 + $0x18] sm:$0xff]
  %v44 = vrot.slane %v40, 7
  %v45 = vrot.slane %v41, 7
  %v46 = vrot.slane %v42, 7
  %v47 = vrot.slane %v43, 7
  %vm48 = vcmp.lt.s32.totalorder %v24, 1
  %v49 = vsel %vm48, %v46, %v47
  %v50 = vsel %vm48, %v45, %v46
  %v51 = vsel %vm48, %v44, %v45
  %v52 = vsel %vm48, %v47, %v44
  %v53 = vsel %vm32, %v52, 0.0
  %v54 = vsel %vm33, %v51, 0.0
  %v55 = vsel %vm34, %v50, 0.0
  %v56 = vsel %vm35, %v49, 0.0
  %v57 = vrot.slane %v40, 1
  %v58 = vrot.slane %v41, 1
  %v59 = vrot.slane %v42, 1
  %v60 = vrot.slane %v43, 1
  %vm61 = vcmp.lt.s32.totalorder %v24, 7
  %v62 = vsel %vm61, %v59, %v60
  %v63 = vsel %vm61, %v58, %v59
  %v64 = vsel %vm61, %v57, %v58
  %v65 = vsel %vm61, %v60, %v57
  %v66 = vsel %vm36, %v64, 0.0
  %v67 = vsel %vm37, %v63, 0.0
  %v68 = vsel %vm38, %v62, 0.0
  %v69 = vsel %vm39, %v65, 0.0
  %v70 = vld [vmem:[%s1] sm:$0xff]
  %v71 = vld [vmem:[%s1 + $0x8] sm:$0xff]
  %v72 = vld [vmem:[%s1 + $0x10] sm:$0xff]
  %v73 = vld [vmem:[%s1 + $0x18] sm:$0xff]
  %v74 = vld [vmem:[%s1 + $0x20] sm:$0xff]
  %v75 = vld [vmem:[%s1 + $0x28] sm:$0xff]
  %v76 = vld [vmem:[%s1 + $0x30] sm:$0xff]
  %v77 = vld [vmem:[%s1 + $0x38] sm:$0xff]
  %v78 = vld [vmem:[%s1 + $0x40] sm:$0xff]
  %v79 = vld [vmem:[%s1 + $0x48] sm:$0xff]
  %v80 = vld [vmem:[%s1 + $0x50] sm:$0xff]
  %v81 = vld [vmem:[%s1 + $0x58] sm:$0xff]
  %v82 = vld [vmem:[%s1 + $0x60] sm:$0xff]
  %v83 = vld [vmem:[%s1 + $0x68] sm:$0xff]
  %v84 = vld [vmem:[%s1 + $0x70] sm:$0xff]
  %v85 = vld [vmem:[%s1 + $0x78] sm:$0xff]
  %v86 = vld [vmem:[%s1 + $0x80] sm:$0xff]
  %v87 = vld [vmem:[%s1 + $0x88] sm:$0xff]
  %v88 = vld [vmem:[%s1 + $0x90] sm:$0xff]
  %v89 = vld [vmem:[%s1 + $0x98] sm:$0xff]
  %v90 = vld [vmem:[%s1 + $0xa0] sm:$0xff]
  %v91 = vld [vmem:[%s1 + $0xa8] sm:$0xff]
  %v92 = vld [vmem:[%s1 + $0xb0] sm:$0xff]
  %v93 = vld [vmem:[%s1 + $0xb8] sm:$0xff]
  %v94 = vld [vmem:[%s1 + $0xc0] sm:$0xff]
  %v95 = vld [vmem:[%s1 + $0xc8] sm:$0xff]
  %v96 = vld [vmem:[%s1 + $0xd0] sm:$0xff]
  %v97 = vld [vmem:[%s1 + $0xd8] sm:$0xff]
  %v98 = vld [vmem:[%s1 + $0xe0] sm:$0xff]
  %v99 = vld [vmem:[%s1 + $0xe8] sm:$0xff]
  %v100 = vld [vmem:[%s1 + $0xf0] sm:$0xff]
  %v101 = vld [vmem:[%s1 + $0xf8] sm:$0xff]
  %v102 = vld [vmem:[%s1 + $0x100] sm:$0xff]
  %v103 = vld [vmem:[%s1 + $0x108] sm:$0xff]
  %v104 = vld [vmem:[%s1 + $0x110] sm:$0xff]
  %v105 = vld [vmem:[%s1 + $0x118] sm:$0xff]
  %v106 = vld [vmem:[%s1 + $0x120] sm:$0xff]
  %v107 = vld [vmem:[%s1 + $0x128] sm:$0xff]
  %v108 = vld [vmem:[%s1 + $0x130] sm:$0xff]
  %v109 = vld [vmem:[%s1 + $0x138] sm:$0xff]
  %v110 = vld [vmem:[%s1 + $0x140] sm:$0xff]
  %v111 = vld [vmem:[%s1 + $0x148] sm:$0xff]
  %v112 = vld [vmem:[%s1 + $0x150] sm:$0xff]
  %v113 = vld [vmem:[%s1 + $0x158] sm:$0xff]
  %v114 = vld [vmem:[%s1 + $0x160] sm:$0xff]
  %v115 = vld [vmem:[%s1 + $0x168] sm:$0xff]
  %v116 = vld [vmem:[%s1 + $0x170] sm:$0xff]
  %v117 = vld [vmem:[%s1 + $0x178] sm:$0xff]
  %118 = vmatprep.subr.mxu0 0.0
  %119 = vmatpush1.msra.mxu0 %v85
  %120 = vmatprep.subr.mxu0 0.0
  %121 = vmatpush1.msra.mxu0 %v84
  %122 = vmatprep.subr.mxu0 0.0
  %123 = vmatpush1.msra.mxu0 %v83
  %124 = vmatprep.subr.mxu0 0.0
  %125 = vmatpush1.msra.mxu0 %v82
  %126 = vmatprep.subr.mxu0 0.0
  %127 = vmatpush1.msra.mxu0 %v81
  %128 = vmatprep.subr.mxu0 0.0
  %129 = vmatpush1.msra.mxu0 %v80
  %130 = vmatprep.subr.mxu0 0.0
  %131 = vmatpush1.msra.mxu0 %v79
  %132 = vmatprep.subr.mxu0 0.0
  %133 = vmatpush1.msra.mxu0 %v78
  %134 = vmatprep.subr.mxu0 0.0
  %135 = vmatpush1.msra.mxu0 %v77
  %136 = vmatprep.subr.mxu0 0.0
  %137 = vmatpush1.msra.mxu0 %v76
  %138 = vmatprep.subr.mxu0 0.0
  %139 = vmatpush1.msra.mxu0 %v75
  %140 = vmatprep.subr.mxu0 0.0
  %141 = vmatpush1.msra.mxu0 %v74
  %142 = vmatprep.subr.mxu0 0.0
  %143 = vmatpush1.msra.mxu0 %v73
  %144 = vmatprep.subr.mxu0 0.0
  %145 = vmatpush1.msra.mxu0 %v72
  %146 = vmatprep.subr.mxu0 0.0
  %147 = vmatpush1.msra.mxu0 %v71
  %148 = vmatprep.subr.mxu0 0.0
  %149 = vmatpush1.msra.mxu0 %v70
  %150 = vmatprep.subr.mxu0 0.0
  %151 = vmatpush2.msra.mxu0 %v101
  %152 = vmatprep.subr.mxu0 0.0
  %153 = vmatpush2.msra.mxu0 %v100
  %154 = vmatprep.subr.mxu0 0.0
  %155 = vmatpush2.msra.mxu0 %v99
  %156 = vmatprep.subr.mxu0 0.0
  %157 = vmatpush2.msra.mxu0 %v98
  %158 = vmatprep.subr.mxu0 0.0
  %159 = vmatpush2.msra.mxu0 %v97
  %160 = vmatprep.subr.mxu0 0.0
  %161 = vmatpush2.msra.mxu0 %v96
  %162 = vmatprep.subr.mxu0 0.0
  %163 = vmatpush2.msra.mxu0 %v95
  %164 = vmatprep.subr.mxu0 0.0
  %165 = vmatpush2.msra.mxu0 %v94
  %166 = vmatprep.subr.mxu0 0.0
  %167 = vmatpush2.msra.mxu0 %v93
  %168 = vmatprep.subr.mxu0 0.0
  %169 = vmatpush2.msra.mxu0 %v92
  %170 = vmatprep.subr.mxu0 0.0
  %171 = vmatpush2.msra.mxu0 %v91
  %172 = vmatprep.subr.mxu0 0.0
  %173 = vmatpush2.msra.mxu0 %v90
  %174 = vmatprep.subr.mxu0 0.0
  %175 = vmatpush2.msra.mxu0 %v89
  %176 = vmatprep.subr.mxu0 0.0
  %177 = vmatpush2.msra.mxu0 %v88
  %178 = vmatprep.subr.mxu0 0.0
  %179 = vmatpush2.msra.mxu0 %v87
  %180 = vmatprep.subr.mxu0 0.0
  %181 = vmatpush2.msra.mxu0 %v86
  %182 = vmatprep.mubr.f32.mxu0 %v40
  %183 = vmatmul.mubr.f32.gmra.mxu0 %v53
  %v184 = vpop.f32.mrf.mxu0
  %v185 = vadd.f32 0.0, %v184
  %v186 = vpop.f32.mrf.mxu0
  %187 = vmatprep.mubr.f32.mxu0 %v41
  %188 = vmatmul.mubr.f32.gmra.mxu0 %v54
  %v189 = vpop.f32.mrf.mxu0
  %v190 = vadd.f32 0.0, %v189
  %v191 = vpop.f32.mrf.mxu0
  %192 = vmatprep.mubr.f32.mxu0 %v42
  %193 = vmatmul.mubr.f32.gmra.mxu0 %v55
  %v194 = vpop.f32.mrf.mxu0
  %v195 = vadd.f32 0.0, %v194
  %v196 = vpop.f32.mrf.mxu0
  %197 = vmatprep.mubr.f32.mxu0 %v43
  %198 = vmatmul.mubr.f32.gmra.mxu0 %v56
  %v199 = vpop.f32.mrf.mxu0
  %v200 = vadd.f32 0.0, %v199
  %v201 = vpop.f32.mrf.mxu0
  %202 = vdwg.mxu0
  %203 = vmatprep.subr.mxu0 0.0
  %204 = vmatpush1.msra.mxu0 %v117
  %205 = vmatprep.subr.mxu0 0.0
  %206 = vmatpush1.msra.mxu0 %v116
  %207 = vmatprep.subr.mxu0 0.0
  %208 = vmatpush1.msra.mxu0 %v115
  %209 = vmatprep.subr.mxu0 0.0
  %210 = vmatpush1.msra.mxu0 %v114
  %211 = vmatprep.subr.mxu0 0.0
  %212 = vmatpush1.msra.mxu0 %v113
  %213 = vmatprep.subr.mxu0 0.0
  %214 = vmatpush1.msra.mxu0 %v112
  %215 = vmatprep.subr.mxu0 0.0
  %216 = vmatpush1.msra.mxu0 %v111
  %217 = vmatprep.subr.mxu0 0.0
  %218 = vmatpush1.msra.mxu0 %v110
  %219 = vmatprep.subr.mxu0 0.0
  %220 = vmatpush1.msra.mxu0 %v109
  %221 = vmatprep.subr.mxu0 0.0
  %222 = vmatpush1.msra.mxu0 %v108
  %223 = vmatprep.subr.mxu0 0.0
  %224 = vmatpush1.msra.mxu0 %v107
  %225 = vmatprep.subr.mxu0 0.0
  %226 = vmatpush1.msra.mxu0 %v106
  %227 = vmatprep.subr.mxu0 0.0
  %228 = vmatpush1.msra.mxu0 %v105
  %229 = vmatprep.subr.mxu0 0.0
  %230 = vmatpush1.msra.mxu0 %v104
  %231 = vmatprep.subr.mxu0 0.0
  %232 = vmatpush1.msra.mxu0 %v103
  %233 = vmatprep.subr.mxu0 0.0
  %234 = vmatpush1.msra.mxu0 %v102
  %235 = vmatprep.subr.mxu0 0.0
  %236 = vmatpush2.msra.mxu0 0.0
  %237 = vmatprep.subr.mxu0 0.0
  %238 = vmatpush2.msra.mxu0 0.0
  %239 = vmatprep.subr.mxu0 0.0
  %240 = vmatpush2.msra.mxu0 0.0
  %241 = vmatprep.subr.mxu0 0.0
  %242 = vmatpush2.msra.mxu0 0.0
  %243 = vmatprep.subr.mxu0 0.0
  %244 = vmatpush2.msra.mxu0 0.0
  %245 = vmatprep.subr.mxu0 0.0
  %246 = vmatpush2.msra.mxu0 0.0
  %247 = vmatprep.subr.mxu0 0.0
  %248 = vmatpush2.msra.mxu0 0.0
  %249 = vmatprep.subr.mxu0 0.0
  %250 = vmatpush2.msra.mxu0 0.0
  %251 = vmatprep.subr.mxu0 0.0
  %252 = vmatpush2.msra.mxu0 0.0
  %253 = vmatprep.subr.mxu0 0.0
  %254 = vmatpush2.msra.mxu0 0.0
  %255 = vmatprep.subr.mxu0 0.0
  %256 = vmatpush2.msra.mxu0 0.0
  %257 = vmatprep.subr.mxu0 0.0
  %258 = vmatpush2.msra.mxu0 0.0
  %259 = vmatprep.subr.mxu0 0.0
  %260 = vmatpush2.msra.mxu0 0.0
  %261 = vmatprep.subr.mxu0 0.0
  %262 = vmatpush2.msra.mxu0 0.0
  %263 = vmatprep.subr.mxu0 0.0
  %264 = vmatpush2.msra.mxu0 0.0
  %265 = vmatprep.subr.mxu0 0.0
  %266 = vmatpush2.msra.mxu0 0.0
  %267 = vmatprep.mubr.f32.mxu0 0.0
  %268 = vmatmul.mubr.f32.gmra.mxu0 %v66
  %v269 = vpop.f32.mrf.mxu0
  %v270 = vadd.f32 %v185, %v269
  %v271 = vpop.f32.mrf.mxu0
  %272 = vmatprep.mubr.f32.mxu0 0.0
  %273 = vmatmul.mubr.f32.gmra.mxu0 %v67
  %v274 = vpop.f32.mrf.mxu0
  %v275 = vadd.f32 %v190, %v274
  %v276 = vpop.f32.mrf.mxu0
  %277 = vmatprep.mubr.f32.mxu0 0.0
  %278 = vmatmul.mubr.f32.gmra.mxu0 %v68
  %v279 = vpop.f32.mrf.mxu0
  %v280 = vadd.f32 %v195, %v279
  %v281 = vpop.f32.mrf.mxu0
  %282 = vmatprep.mubr.f32.mxu0 0.0
  %283 = vmatmul.mubr.f32.gmra.mxu0 %v69
  %v284 = vpop.f32.mrf.mxu0
  %v285 = vadd.f32 %v200, %v284
  %v286 = vpop.f32.mrf.mxu0
  %287 = vdwg.mxu0
  %v288 = vadd.f32 %v270, %v275
  %v289 = vadd.f32 %v288, %v280
  %v290 = vadd.f32 %v289, %v285
  %v291 = vrot.slane %v290, 4
  %v292 = vadd.f32 %v290, %v291
  %v293 = vrot.slane %v292, 2
  %v294 = vadd.f32 %v292, %v293
  %v295 = vrot.slane %v294, 1
  %v296 = vadd.f32 %v294, %v295
  %297 = vrot.lane.b32.xlu0 %v296, 8
  %v298 = vpop.permute.xlu0 %297
  %v299 = vadd.f32 %v296, %v298
  %300 = vrot.lane.b32.xlu0 %v299, 16
  %v301 = vpop.permute.xlu0 %300
  %v302 = vadd.f32 %v299, %v301
  %303 = vrot.lane.b32.xlu0 %v302, 32
  %v304 = vpop.permute.xlu0 %303
  %v305 = vadd.f32 %v302, %v304
  %306 = vrot.lane.b32.xlu0 %v305, 64
  %v307 = vpop.permute.xlu0 %306
  %v308 = vadd.f32 %v305, %v307
  %v309 = vmul.f32 %v308, 0.001953125
  %v310 = vmul.f32 %v270, %v270
  %v311 = vmul.f32 %v275, %v275
  %v312 = vmul.f32 %v280, %v280
  %v313 = vmul.f32 %v285, %v285
  %v314 = vadd.f32 %v310, %v311
  %v315 = vadd.f32 %v314, %v312
  %v316 = vadd.f32 %v315, %v313
  %v317 = vrot.slane %v316, 4
  %v318 = vadd.f32 %v316, %v317
  %v319 = vrot.slane %v318, 2
  %v320 = vadd.f32 %v318, %v319
  %v321 = vrot.slane %v320, 1
  %v322 = vadd.f32 %v320, %v321
  %323 = vrot.lane.b32.xlu0 %v322, 8
  %v324 = vpop.permute.xlu0 %323
  %v325 = vadd.f32 %v322, %v324
  %326 = vrot.lane.b32.xlu0 %v325, 16
  %v327 = vpop.permute.xlu0 %326
  %v328 = vadd.f32 %v325, %v327
  %329 = vrot.lane.b32.xlu0 %v328, 32
  %v330 = vpop.permute.xlu0 %329
  %v331 = vadd.f32 %v328, %v330
  %332 = vrot.lane.b32.xlu0 %v331, 64
  %v333 = vpop.permute.xlu0 %332
  %v334 = vadd.f32 %v331, %v333
  %v335 = vmul.f32 %v334, 0.001953125
  %v336 = vmul.f32 %v309, %v309
  %v337 = vsub.f32 %v335, %v336
  %v338 = vadd.f32 %v337, 1e-05
  %v339 = vrsqrt.pop %v338
  %v340 = vmul.f32 %v22, %v339
  %v341 = vmul.f32 %v309, %v340
  %v343 = vrot.slane %v341, 7
  %v345 = vsub.f32 %v22, %v343
  %v346 = vlaneseq
  %v347 = vshrl.u32 %v346, 7
  %v348 = vsub.s32 0, %v347
  %v349 = vrot.slane %v340, %v348
  %v350 = vmul.f32 %v270, %v349
  %v351 = vmul.f32 %v275, %v349
  %v352 = vmul.f32 %v280, %v349
  %v353 = vmul.f32 %v285, %v349
  %v354 = vlaneseq
  %v355 = vshrl.u32 %v354, 7
  %v356 = vsub.s32 1, %v355
  %v357 = vrot.slane %v345, %v356
  %v358 = vadd.f32 %v350, %v357
  %v359 = vadd.f32 %v351, %v357
  %v360 = vadd.f32 %v352, %v357
  %v361 = vadd.f32 %v353, %v357
  %vm362 = vcmp.ge.f32.partialorder %v358, 0.0
  %vm363 = vcmp.ge.f32.partialorder %v359, 0.0
  %vm364 = vcmp.ge.f32.partialorder %v360, 0.0
  %vm365 = vcmp.ge.f32.partialorder %v361, 0.0
  %v366 = vstv %s21
  %v367 = vmul.f32 %v366, %v358
  %v368 = vmul.f32 %v366, %v359
  %v369 = vmul.f32 %v366, %v360
  %v370 = vmul.f32 %v366, %v361
  %v371 = vsel %vm362, %v358, %v367
  %v372 = vsel %vm363, %v359, %v368
  %v373 = vsel %vm364, %v360, %v369
  %v374 = vsel %vm365, %v361, %v370
  %v375 = vrot.slane %v371, 7
  %v376 = vrot.slane %v372, 7
  %v377 = vrot.slane %v373, 7
  %v378 = vrot.slane %v374, 7
  %v379 = vsel %vm48, %v377, %v378
  %v380 = vsel %vm48, %v376, %v377
  %v381 = vsel %vm48, %v375, %v376
  %v382 = vsel %vm48, %v378, %v375
  %v383 = vsel %vm32, %v382, 0.0
  %v384 = vsel %vm33, %v381, 0.0
  %v385 = vsel %vm34, %v380, 0.0
  %v386 = vsel %vm35, %v379, 0.0
  %v387 = vrot.slane %v371, 1
  %v388 = vrot.slane %v372, 1
  %v389 = vrot.slane %v373, 1
  %v390 = vrot.slane %v374, 1
  %v391 = vsel %vm61, %v389, %v390
  %v392 = vsel %vm61, %v388, %v389
  %v393 = vsel %vm61, %v387, %v388
  %v394 = vsel %vm61, %v390, %v387
  %v395 = vsel %vm36, %v393, 0.0
  %v396 = vsel %vm37, %v392, 0.0
  %v397 = vsel %vm38, %v391, 0.0
  %v398 = vsel %vm39, %v394, 0.0
  %v399 = vld [vmem:[%s2] sm:$0xff]
  %v400 = vld [vmem:[%s2 + $0x8] sm:$0xff]
  %v401 = vld [vmem:[%s2 + $0x10] sm:$0xff]
  %v402 = vld [vmem:[%s2 + $0x18] sm:$0xff]
  %v403 = vld [vmem:[%s2 + $0x20] sm:$0xff]
  %v404 = vld [vmem:[%s2 + $0x28] sm:$0xff]
  %v405 = vld [vmem:[%s2 + $0x30] sm:$0xff]
  %v406 = vld [vmem:[%s2 + $0x38] sm:$0xff]
  %v407 = vld [vmem:[%s2 + $0x40] sm:$0xff]
  %v408 = vld [vmem:[%s2 + $0x48] sm:$0xff]
  %v409 = vld [vmem:[%s2 + $0x50] sm:$0xff]
  %v410 = vld [vmem:[%s2 + $0x58] sm:$0xff]
  %v411 = vld [vmem:[%s2 + $0x60] sm:$0xff]
  %v412 = vld [vmem:[%s2 + $0x68] sm:$0xff]
  %v413 = vld [vmem:[%s2 + $0x70] sm:$0xff]
  %v414 = vld [vmem:[%s2 + $0x78] sm:$0xff]
  %v415 = vld [vmem:[%s2 + $0x80] sm:$0xff]
  %v416 = vld [vmem:[%s2 + $0x88] sm:$0xff]
  %v417 = vld [vmem:[%s2 + $0x90] sm:$0xff]
  %v418 = vld [vmem:[%s2 + $0x98] sm:$0xff]
  %v419 = vld [vmem:[%s2 + $0xa0] sm:$0xff]
  %v420 = vld [vmem:[%s2 + $0xa8] sm:$0xff]
  %v421 = vld [vmem:[%s2 + $0xb0] sm:$0xff]
  %v422 = vld [vmem:[%s2 + $0xb8] sm:$0xff]
  %v423 = vld [vmem:[%s2 + $0xc0] sm:$0xff]
  %v424 = vld [vmem:[%s2 + $0xc8] sm:$0xff]
  %v425 = vld [vmem:[%s2 + $0xd0] sm:$0xff]
  %v426 = vld [vmem:[%s2 + $0xd8] sm:$0xff]
  %v427 = vld [vmem:[%s2 + $0xe0] sm:$0xff]
  %v428 = vld [vmem:[%s2 + $0xe8] sm:$0xff]
  %v429 = vld [vmem:[%s2 + $0xf0] sm:$0xff]
  %v430 = vld [vmem:[%s2 + $0xf8] sm:$0xff]
  %v431 = vld [vmem:[%s2 + $0x100] sm:$0xff]
  %v432 = vld [vmem:[%s2 + $0x108] sm:$0xff]
  %v433 = vld [vmem:[%s2 + $0x110] sm:$0xff]
  %v434 = vld [vmem:[%s2 + $0x118] sm:$0xff]
  %v435 = vld [vmem:[%s2 + $0x120] sm:$0xff]
  %v436 = vld [vmem:[%s2 + $0x128] sm:$0xff]
  %v437 = vld [vmem:[%s2 + $0x130] sm:$0xff]
  %v438 = vld [vmem:[%s2 + $0x138] sm:$0xff]
  %v439 = vld [vmem:[%s2 + $0x140] sm:$0xff]
  %v440 = vld [vmem:[%s2 + $0x148] sm:$0xff]
  %v441 = vld [vmem:[%s2 + $0x150] sm:$0xff]
  %v442 = vld [vmem:[%s2 + $0x158] sm:$0xff]
  %v443 = vld [vmem:[%s2 + $0x160] sm:$0xff]
  %v444 = vld [vmem:[%s2 + $0x168] sm:$0xff]
  %v445 = vld [vmem:[%s2 + $0x170] sm:$0xff]
  %v446 = vld [vmem:[%s2 + $0x178] sm:$0xff]
  %447 = vmatprep.subr.mxu0 0.0
  %448 = vmatpush1.msra.mxu0 %v414
  %449 = vmatprep.subr.mxu0 0.0
  %450 = vmatpush1.msra.mxu0 %v413
  %451 = vmatprep.subr.mxu0 0.0
  %452 = vmatpush1.msra.mxu0 %v412
  %453 = vmatprep.subr.mxu0 0.0
  %454 = vmatpush1.msra.mxu0 %v411
  %455 = vmatprep.subr.mxu0 0.0
  %456 = vmatpush1.msra.mxu0 %v410
  %457 = vmatprep.subr.mxu0 0.0
  %458 = vmatpush1.msra.mxu0 %v409
  %459 = vmatprep.subr.mxu0 0.0
  %460 = vmatpush1.msra.mxu0 %v408
  %461 = vmatprep.subr.mxu0 0.0
  %462 = vmatpush1.msra.mxu0 %v407
  %463 = vmatprep.subr.mxu0 0.0
  %464 = vmatpush1.msra.mxu0 %v406
  %465 = vmatprep.subr.mxu0 0.0
  %466 = vmatpush1.msra.mxu0 %v405
  %467 = vmatprep.subr.mxu0 0.0
  %468 = vmatpush1.msra.mxu0 %v404
  %469 = vmatprep.subr.mxu0 0.0
  %470 = vmatpush1.msra.mxu0 %v403
  %471 = vmatprep.subr.mxu0 0.0
  %472 = vmatpush1.msra.mxu0 %v402
  %473 = vmatprep.subr.mxu0 0.0
  %474 = vmatpush1.msra.mxu0 %v401
  %475 = vmatprep.subr.mxu0 0.0
  %476 = vmatpush1.msra.mxu0 %v400
  %477 = vmatprep.subr.mxu0 0.0
  %478 = vmatpush1.msra.mxu0 %v399
  %479 = vmatprep.subr.mxu0 0.0
  %480 = vmatpush2.msra.mxu0 %v430
  %481 = vmatprep.subr.mxu0 0.0
  %482 = vmatpush2.msra.mxu0 %v429
  %483 = vmatprep.subr.mxu0 0.0
  %484 = vmatpush2.msra.mxu0 %v428
  %485 = vmatprep.subr.mxu0 0.0
  %486 = vmatpush2.msra.mxu0 %v427
  %487 = vmatprep.subr.mxu0 0.0
  %488 = vmatpush2.msra.mxu0 %v426
  %489 = vmatprep.subr.mxu0 0.0
  %490 = vmatpush2.msra.mxu0 %v425
  %491 = vmatprep.subr.mxu0 0.0
  %492 = vmatpush2.msra.mxu0 %v424
  %493 = vmatprep.subr.mxu0 0.0
  %494 = vmatpush2.msra.mxu0 %v423
  %495 = vmatprep.subr.mxu0 0.0
  %496 = vmatpush2.msra.mxu0 %v422
  %497 = vmatprep.subr.mxu0 0.0
  %498 = vmatpush2.msra.mxu0 %v421
  %499 = vmatprep.subr.mxu0 0.0
  %500 = vmatpush2.msra.mxu0 %v420
  %501 = vmatprep.subr.mxu0 0.0
  %502 = vmatpush2.msra.mxu0 %v419
  %503 = vmatprep.subr.mxu0 0.0
  %504 = vmatpush2.msra.mxu0 %v418
  %505 = vmatprep.subr.mxu0 0.0
  %506 = vmatpush2.msra.mxu0 %v417
  %507 = vmatprep.subr.mxu0 0.0
  %508 = vmatpush2.msra.mxu0 %v416
  %509 = vmatprep.subr.mxu0 0.0
  %510 = vmatpush2.msra.mxu0 %v415
  %511 = vmatprep.mubr.f32.mxu0 %v371
  %512 = vmatmul.mubr.f32.gmra.mxu0 %v383
  %v513 = vpop.f32.mrf.mxu0
  %v514 = vadd.f32 0.0, %v513
  %v515 = vpop.f32.mrf.mxu0
  %516 = vmatprep.mubr.f32.mxu0 %v372
  %517 = vmatmul.mubr.f32.gmra.mxu0 %v384
  %v518 = vpop.f32.mrf.mxu0
  %v519 = vadd.f32 0.0, %v518
  %v520 = vpop.f32.mrf.mxu0
  %521 = vmatprep.mubr.f32.mxu0 %v373
  %522 = vmatmul.mubr.f32.gmra.mxu0 %v385
  %v523 = vpop.f32.mrf.mxu0
  %v524 = vadd.f32 0.0, %v523
  %v525 = vpop.f32.mrf.mxu0
  %526 = vmatprep.mubr.f32.mxu0 %v374
  %527 = vmatmul.mubr.f32.gmra.mxu0 %v386
  %v528 = vpop.f32.mrf.mxu0
  %v529 = vadd.f32 0.0, %v528
  %v530 = vpop.f32.mrf.mxu0
  %531 = vdwg.mxu0
  %532 = vmatprep.subr.mxu0 0.0
  %533 = vmatpush1.msra.mxu0 %v446
  %534 = vmatprep.subr.mxu0 0.0
  %535 = vmatpush1.msra.mxu0 %v445
  %536 = vmatprep.subr.mxu0 0.0
  %537 = vmatpush1.msra.mxu0 %v444
  %538 = vmatprep.subr.mxu0 0.0
  %539 = vmatpush1.msra.mxu0 %v443
  %540 = vmatprep.subr.mxu0 0.0
  %541 = vmatpush1.msra.mxu0 %v442
  %542 = vmatprep.subr.mxu0 0.0
  %543 = vmatpush1.msra.mxu0 %v441
  %544 = vmatprep.subr.mxu0 0.0
  %545 = vmatpush1.msra.mxu0 %v440
  %546 = vmatprep.subr.mxu0 0.0
  %547 = vmatpush1.msra.mxu0 %v439
  %548 = vmatprep.subr.mxu0 0.0
  %549 = vmatpush1.msra.mxu0 %v438
  %550 = vmatprep.subr.mxu0 0.0
  %551 = vmatpush1.msra.mxu0 %v437
  %552 = vmatprep.subr.mxu0 0.0
  %553 = vmatpush1.msra.mxu0 %v436
  %554 = vmatprep.subr.mxu0 0.0
  %555 = vmatpush1.msra.mxu0 %v435
  %556 = vmatprep.subr.mxu0 0.0
  %557 = vmatpush1.msra.mxu0 %v434
  %558 = vmatprep.subr.mxu0 0.0
  %559 = vmatpush1.msra.mxu0 %v433
  %560 = vmatprep.subr.mxu0 0.0
  %561 = vmatpush1.msra.mxu0 %v432
  %562 = vmatprep.subr.mxu0 0.0
  %563 = vmatpush1.msra.mxu0 %v431
  %564 = vmatprep.subr.mxu0 0.0
  %565 = vmatpush2.msra.mxu0 0.0
  %566 = vmatprep.subr.mxu0 0.0
  %567 = vmatpush2.msra.mxu0 0.0
  %568 = vmatprep.subr.mxu0 0.0
  %569 = vmatpush2.msra.mxu0 0.0
  %570 = vmatprep.subr.mxu0 0.0
  %571 = vmatpush2.msra.mxu0 0.0
  %572 = vmatprep.subr.mxu0 0.0
  %573 = vmatpush2.msra.mxu0 0.0
  %574 = vmatprep.subr.mxu0 0.0
  %575 = vmatpush2.msra.mxu0 0.0
  %576 = vmatprep.subr.mxu0 0.0
  %577 = vmatpush2.msra.mxu0 0.0
  %578 = vmatprep.subr.mxu0 0.0
  %579 = vmatpush2.msra.mxu0 0.0
  %580 = vmatprep.subr.mxu0 0.0
  %581 = vmatpush2.msra.mxu0 0.0
  %582 = vmatprep.subr.mxu0 0.0
  %583 = vmatpush2.msra.mxu0 0.0
  %584 = vmatprep.subr.mxu0 0.0
  %585 = vmatpush2.msra.mxu0 0.0
  %586 = vmatprep.subr.mxu0 0.0
  %587 = vmatpush2.msra.mxu0 0.0
  %588 = vmatprep.subr.mxu0 0.0
  %589 = vmatpush2.msra.mxu0 0.0
  %590 = vmatprep.subr.mxu0 0.0
  %591 = vmatpush2.msra.mxu0 0.0
  %592 = vmatprep.subr.mxu0 0.0
  %593 = vmatpush2.msra.mxu0 0.0
  %594 = vmatprep.subr.mxu0 0.0
  %595 = vmatpush2.msra.mxu0 0.0
  %596 = vmatprep.mubr.f32.mxu0 0.0
  %597 = vmatmul.mubr.f32.gmra.mxu0 %v395
  %v598 = vpop.f32.mrf.mxu0
  %v599 = vadd.f32 %v514, %v598
  %v600 = vpop.f32.mrf.mxu0
  %601 = vmatprep.mubr.f32.mxu0 0.0
  %602 = vmatmul.mubr.f32.gmra.mxu0 %v396
  %v603 = vpop.f32.mrf.mxu0
  %v604 = vadd.f32 %v519, %v603
  %v605 = vpop.f32.mrf.mxu0
  %606 = vmatprep.mubr.f32.mxu0 0.0
  %607 = vmatmul.mubr.f32.gmra.mxu0 %v397
  %v608 = vpop.f32.mrf.mxu0
  %v609 = vadd.f32 %v524, %v608
  %v610 = vpop.f32.mrf.mxu0
  %611 = vmatprep.mubr.f32.mxu0 0.0
  %612 = vmatmul.mubr.f32.gmra.mxu0 %v398
  %v613 = vpop.f32.mrf.mxu0
  %v614 = vadd.f32 %v529, %v613
  %v615 = vpop.f32.mrf.mxu0
  %616 = vdwg.mxu0
  %v617 = vadd.f32 %v599, %v604
  %v618 = vadd.f32 %v617, %v609
  %v619 = vadd.f32 %v618, %v614
  %v620 = vrot.slane %v619, 4
  %v621 = vadd.f32 %v619, %v620
  %v622 = vrot.slane %v621, 2
  %v623 = vadd.f32 %v621, %v622
  %v624 = vrot.slane %v623, 1
  %v625 = vadd.f32 %v623, %v624
  %626 = vrot.lane.b32.xlu0 %v625, 8
  %v627 = vpop.permute.xlu0 %626
  %v628 = vadd.f32 %v625, %v627
  %629 = vrot.lane.b32.xlu0 %v628, 16
  %v630 = vpop.permute.xlu0 %629
  %v631 = vadd.f32 %v628, %v630
  %632 = vrot.lane.b32.xlu0 %v631, 32
  %v633 = vpop.permute.xlu0 %632
  %v634 = vadd.f32 %v631, %v633
  %635 = vrot.lane.b32.xlu0 %v634, 64
  %v636 = vpop.permute.xlu0 %635
  %v637 = vadd.f32 %v634, %v636
  %v638 = vmul.f32 %v637, 0.001953125
  %v639 = vmul.f32 %v599, %v599
  %v640 = vmul.f32 %v604, %v604
  %v641 = vmul.f32 %v609, %v609
  %v642 = vmul.f32 %v614, %v614
  %v643 = vadd.f32 %v639, %v640
  %v644 = vadd.f32 %v643, %v641
  %v645 = vadd.f32 %v644, %v642
  %v646 = vrot.slane %v645, 4
  %v647 = vadd.f32 %v645, %v646
  %v648 = vrot.slane %v647, 2
  %v649 = vadd.f32 %v647, %v648
  %v650 = vrot.slane %v649, 1
  %v651 = vadd.f32 %v649, %v650
  %652 = vrot.lane.b32.xlu0 %v651, 8
  %v653 = vpop.permute.xlu0 %652
  %v654 = vadd.f32 %v651, %v653
  %655 = vrot.lane.b32.xlu0 %v654, 16
  %v656 = vpop.permute.xlu0 %655
  %v657 = vadd.f32 %v654, %v656
  %658 = vrot.lane.b32.xlu0 %v657, 32
  %v659 = vpop.permute.xlu0 %658
  %v660 = vadd.f32 %v657, %v659
  %661 = vrot.lane.b32.xlu0 %v660, 64
  %v662 = vpop.permute.xlu0 %661
  %v663 = vadd.f32 %v660, %v662
  %v664 = vmul.f32 %v663, 0.001953125
  %v665 = vmul.f32 %v638, %v638
  %v666 = vsub.f32 %v664, %v665
  %v667 = vadd.f32 %v666, 1e-05
  %v668 = vrsqrt.pop %v667
  %v669 = vmul.f32 %v22, %v668
  %v670 = vmul.f32 %v638, %v669
  %v672 = vrot.slane %v670, 7
  %v674 = vsub.f32 %v22, %v672
  %v675 = vlaneseq
  %v676 = vshrl.u32 %v675, 7
  %v677 = vsub.s32 0, %v676
  %v678 = vrot.slane %v669, %v677
  %v679 = vmul.f32 %v599, %v678
  %v680 = vmul.f32 %v604, %v678
  %v681 = vmul.f32 %v609, %v678
  %v682 = vmul.f32 %v614, %v678
  %v683 = vlaneseq
  %v684 = vshrl.u32 %v683, 7
  %v685 = vsub.s32 1, %v684
  %v686 = vrot.slane %v674, %v685
  %v687 = vadd.f32 %v679, %v686
  %v688 = vadd.f32 %v680, %v686
  %v689 = vadd.f32 %v681, %v686
  %v690 = vadd.f32 %v682, %v686
  %vm691 = vcmp.ge.f32.partialorder %v687, 0.0
  %vm692 = vcmp.ge.f32.partialorder %v688, 0.0
  %vm693 = vcmp.ge.f32.partialorder %v689, 0.0
  %vm694 = vcmp.ge.f32.partialorder %v690, 0.0
  %v695 = vmul.f32 %v366, %v687
  %v696 = vmul.f32 %v366, %v688
  %v697 = vmul.f32 %v366, %v689
  %v698 = vmul.f32 %v366, %v690
  %v699 = vsel %vm691, %v687, %v695
  %v700 = vsel %vm692, %v688, %v696
  %v701 = vsel %vm693, %v689, %v697
  %v702 = vsel %vm694, %v690, %v698
  %v703 = vadd.f32 %v699, %v40
  %v704 = vadd.f32 %v700, %v41
  %v705 = vadd.f32 %v701, %v42
  %v706 = vadd.f32 %v702, %v43
  %707 = vst [vmem:[%s5] sm:$0xff] %v703
  %708 = vst [vmem:[%s5 + $0x8] sm:$0xff] %v704
  %709 = vst [vmem:[%s5 + $0x10] sm:$0xff] %v705
  %710 = vst [vmem:[%s5 + $0x18] sm:$0xff] %v706
  // Predicated region
  $region22: #{resnet_block_forward_nhwc.1} parent=0 // pred_check
    _
  $region23: #{resnet_block_forward_nhwc.1} parent=0 // pred_check_branch
    %712 = sbr.rel (0) target = $region25
  $region24: #{resnet_block_forward_nhwc.1} parent=0 // pred_region
    _
  $region25: #{resnet_block_forward_nhwc.1} parent=0 // pred_fallthru
    _
  // Predicated region
  $region26: #{resnet_block_forward_nhwc.1} parent=0 // pred_check
    _
  $region27: #{resnet_block_forward_nhwc.1} parent=0 // pred_check_branch
    %714 = sbr.rel (0) target = $region29
  $region28: #{resnet_block_forward_nhwc.1} parent=0 // pred_region
    _
  $region29: #{resnet_block_forward_nhwc.1} parent=0 // pred_fallthru
    _

</llo_original>
